<compile_context>
chip_gen: v6e
topology: v6e:2x2x1
jax: 0.10.0
libtpu: 0.0.40
codegen_flags: <defaults>
</compile_context>

<pallas_src>
import jax
import jax.numpy as jnp
from jax import lax
from jax.experimental import pallas as pl
from jax.experimental.pallas import tpu as pltpu


def gaussian_mf_kernel(params_ref, x_ref, o_ref):
    # params_ref: SMEM (2,) f32 -> [mu, scale] with scale = -0.5 / sigma^2
    # x_ref/o_ref: VMEM (block_rows, lanes), input dtype (f32 or bf16)
    mu = params_ref[0]
    scale = params_ref[1]
    d = x_ref[...].astype(jnp.float32) - mu
    o_ref[...] = jnp.exp(scale * (d * d)).astype(o_ref.dtype)


def _round_down(v, m):
    return (v // m) * m


def _pick_lanes(n, max_lanes):
    for l in (2048, 1024, 512, 256, 128):
        if l <= max_lanes and n % l == 0:
            return l
    return None


def _gaussian_mf_2d(x2, params, block_rows, lanes):
    rows = x2.shape[0]
    grid = (pl.cdiv(rows, block_rows),)
    return pl.pallas_call(
        gaussian_mf_kernel,
        out_shape=jax.ShapeDtypeStruct((rows, lanes), x2.dtype),
        grid=grid,
        in_specs=[
            pl.BlockSpec(memory_space=pltpu.SMEM),                 # [mu, scale]
            pl.BlockSpec((block_rows, lanes), lambda i: (i, 0)),   # x tile
        ],
        out_specs=pl.BlockSpec((block_rows, lanes), lambda i: (i, 0)),
        compiler_params=pltpu.CompilerParams(
            dimension_semantics=("parallel",)),
    )(params, x2)


def gaussian_mf(x, mu, sigma, *, max_lanes=2048,
                target_block_bytes=2 * 1024 * 1024, min_grid_steps=4):
    """x: (batch,) -> (batch,) membership values exp(-0.5*((x-mu)/sigma)^2).

    Output dtype follows x.dtype (f32 or bf16); math is always f32 in-kernel.
    """
    n = x.shape[0]
    dtype = x.dtype if x.dtype in (jnp.float32, jnp.bfloat16) else jnp.float32
    x = x.astype(dtype)
    itemsize = jnp.dtype(dtype).itemsize
    sub = 8 * max(1, 4 // itemsize)          # sublane multiple: 8 f32, 16 bf16

    # Hoist the divide out of the kernel (EUP slot is shared with exp).
    mu32 = jnp.asarray(mu, jnp.float32)
    sigma32 = jnp.asarray(sigma, jnp.float32)
    scale = (-0.5) / (sigma32 * sigma32)
    params = jnp.stack([mu32, scale]).astype(jnp.float32)

    def jnp_path(v):                          # tiny inputs / ragged tail
        d = v.astype(jnp.float32) - mu32
        return jnp.exp(scale * (d * d)).astype(dtype)

    def aligned(v):                           # v.shape[0] % 128 == 0, > 0
        m = v.shape[0]
        lanes = _pick_lanes(m, max_lanes)
        rows = m // lanes
        if rows < 2 * sub:
            block_rows = rows                 # single full-dim block
        else:
            target_rows = max(
                sub, _round_down(target_block_bytes // (lanes * itemsize), sub))
            steps = min(min_grid_steps, rows // sub)   # >= 2 here
            cap = max(sub, _round_down(rows // steps, sub))
            block_rows = min(target_rows, cap)         # grid >= steps
        out = _gaussian_mf_2d(v.reshape(rows, lanes), params, block_rows, lanes)
        return out.reshape(m)                 # contiguous -> free bitcast

    if n == 0:
        return jnp_path(x)
    if n % 128 == 0:
        return aligned(x)                     # zero-copy reshape, no pad/slice

    bulk = _round_down(n, 128)
    if bulk == 0:                             # < 128 elements: not worth a kernel
        return jnp_path(x)
    # Ragged batch: kernel on the 128-aligned bulk, plain jnp on the short tail.
    y_bulk = aligned(lax.slice(x, (0,), (bulk,)))
    y_tail = jnp_path(lax.slice(x, (bulk,), (n,)))
    return jnp.concatenate([y_bulk, y_tail])


if __name__ == "__main__":
    key = jax.random.PRNGKey(0)
    k1, k2, k3, k4 = jax.random.split(key, 4)

    def ref(xv, mu, sigma):
        return jnp.exp(-0.5 * ((xv.astype(jnp.float32) - mu) / sigma) ** 2)

    # Case 1: module-consistent small batch (single aligned block, no pad).
    mu1, s1 = 0.5, 1.25
    x1 = jax.random.normal(k1, (128,), dtype=jnp.float32)
    y1 = jax.block_until_ready(gaussian_mf(x1, mu1, s1))
    assert y1.shape == (128,) and y1.dtype == jnp.float32
    assert jnp.allclose(y1, ref(x1, mu1, s1), atol=1e-6, rtol=1e-6)

    # Case 2: multi-step "parallel" grid with a masked partial last block
    # (rows=43, block_rows=8 -> grid=6), forced small via the knobs.
    mu2, s2 = -0.25, 0.8
    x2 = jax.random.normal(k2, (43 * 128,), dtype=jnp.float32)
    y2 = jax.block_until_ready(
        gaussian_mf(x2, mu2, s2, max_lanes=128, target_block_bytes=4096))
    assert y2.shape == x2.shape
    assert jnp.allclose(y2, ref(x2, mu2, s2), atol=1e-6, rtol=1e-6)

    # Case 3: ragged batch -> kernel on the 128-aligned bulk + jnp tail
    # (no whole-array pad or slice).
    mu3, s3 = 1.5, 0.4
    x3 = jax.random.normal(k3, (3109,), dtype=jnp.float32)
    y3 = jax.block_until_ready(gaussian_mf(x3, mu3, s3))
    assert y3.shape == (3109,)
    assert jnp.allclose(y3, ref(x3, mu3, s3), atol=1e-6, rtol=1e-6)

    # Case 4: bf16 I/O (halves HBM bytes); math stays f32 inside the kernel.
    mu4, s4 = 0.0, 2.0
    x4 = jax.random.normal(k4, (2048,), dtype=jnp.float32).astype(jnp.bfloat16)
    y4 = jax.block_until_ready(gaussian_mf(x4, mu4, s4))
    assert y4.shape == (2048,) and y4.dtype == jnp.bfloat16
    assert jnp.allclose(y4.astype(jnp.float32), ref(x4, mu4, s4),
                        atol=2e-2, rtol=2e-2)

    print("KERNEL_OK")
</pallas_src>

<mosaic_0001>
module attributes {stable_mosaic.version = 11 : i64} {
  func.func @gaussian_mf_kernel(%arg0: i32, %arg1: memref<2xf32, #tpu.memory_space<smem>>, %arg2: memref<1x128xf32, #tpu.memory_space<vmem>>, %arg3: memref<1x128xf32, #tpu.memory_space<vmem>>) attributes {dimension_semantics = [#tpu.dimension_semantics<parallel>], iteration_bounds = array<i64: 1>, scalar_prefetch = 0 : i64, scratch_operands = 0 : i64, tpu.core_type = #tpu.core_type<tc>, window_params = [{transform_indices = @transform_0, window_bounds = array<i64: 2>}, {transform_indices = @transform_1, window_bounds = array<i64: 1, 128>}, {transform_indices = @transform_2, window_bounds = array<i64: 1, 128>}]} {
    %c0 = arith.constant 0 : index
    %0 = memref.load %arg1[%c0] : memref<2xf32, #tpu.memory_space<smem>>
    %c1 = arith.constant 1 : index
    %1 = memref.load %arg1[%c1] : memref<2xf32, #tpu.memory_space<smem>>
    %c0_0 = arith.constant 0 : index
    %c0_1 = arith.constant 0 : index
    %2 = vector.load %arg2[%c0_0, %c0_1] : memref<1x128xf32, #tpu.memory_space<vmem>>, vector<1x128xf32>
    %3 = vector.broadcast %0 : f32 to vector<1x128xf32>
    %4 = arith.subf %2, %3 : vector<1x128xf32>
    %5 = arith.mulf %4, %4 : vector<1x128xf32>
    %6 = vector.broadcast %1 : f32 to vector<1x128xf32>
    %7 = arith.mulf %6, %5 : vector<1x128xf32>
    %8 = math.exp %7 : vector<1x128xf32>
    %c0_2 = arith.constant 0 : index
    %c0_3 = arith.constant 0 : index
    %9 = vector.load %arg3[%c0_2, %c0_3] : memref<1x128xf32, #tpu.memory_space<vmem>>, vector<1x128xf32>
    tpu.vector_store %arg3[%c0_2, %c0_3], %8 {strides = array<i32>} : memref<1x128xf32, #tpu.memory_space<vmem>>, vector<1x128xf32>,
    return
  }
  func.func @transform_0(%arg0: i32) -> i32 {
    %c0_i32 = arith.constant 0 : i32
    %c0_i32_0 = arith.constant 0 : i32
    return %c0_i32 : i32
  }
  func.func @transform_1(%arg0: i32) -> (i32, i32) {
    %c0_i32 = arith.constant 0 : i32
    %c0_i32_0 = arith.constant 0 : i32
    return %arg0, %c0_i32 : i32, i32
  }
  func.func @transform_2(%arg0: i32) -> (i32, i32) {
    %c0_i32 = arith.constant 0 : i32
    %c0_i32_0 = arith.constant 0 : i32
    return %arg0, %c0_i32 : i32, i32
  }
}

</mosaic_0001>

<llo_original>
// kernel: tpu_custom_call.1
$region0: #{tpu_custom_call.1}
  #allocation0 [shape = 'u32[]', space=smem, size = 0x4, offset = 0x4, fixed_abs, tag = 'smem constant byte address 0x4 - core index']
  #allocation1 [shape = 'u32[144,128]{1,0:T(1,128)}', space=vmem, size = 0x12000, scoped, tag = 'internal scratch']
  %s0 = inlined_call_operand.hbm [shape: f32[2], index: 0, kind: input, shape index: {}]
  %s1 = inlined_call_operand.vmem [shape: f32[1,128], index: 1, kind: input, shape index: {}]
  %s2 = inlined_call_operand.hbm [shape: f32[1,128], index: 2, kind: output, shape index: {}]
  %s3 = sld [smem:[#allocation0]]
  $region22: #{tpu_custom_call.1} parent=0
    _
  %s5 = ssub.s32 1, %s3
  %s6 = scalar_select 0, %s5, %s3
  $region1: #{tpu_custom_call.1} parent=0
    #allocation2 [shape = 'u8[512]{0}', space=smem, size = 0x200, scoped, tag = 'input window, operand 0, single buffered']
    #allocation3 [shape = 's32[1]{0}', space=sflag, size = 0x4, scoped, tag = 'scoped memory for tpu_custom_call.1']
    #allocation4 [shape = 's32[1]{0}', space=sflag, size = 0x4, scoped, tag = 'scoped memory for tpu_custom_call.1']
    #allocation5 [shape = 'u8[512]{0}', space=vmem, size = 0x400, scoped, tag = 'output window, operand 0, single buffered']
    %7 = vsyncpa [#allocation4], 0
    %8 = vsyncpa [#allocation3], 0
    // Predicated region
    $region2: #{tpu_custom_call.1} parent=1 // pred_check
      _
    $region3: #{tpu_custom_call.1} parent=1 // pred_check_branch
      %10 = sbr.rel (0) target = $region5
    $region4: #{tpu_custom_call.1} parent=1 // pred_region
      %s12 = ssub.s32 16, 16
      %13 = vsyncadd [#allocation4], %s12
      %16 = dma.hbm_to_smem %s0, 16, [#allocation2], [#allocation4]
    $region5: #{tpu_custom_call.1} parent=1 // pred_fallthru
      _
    // Predicated region
    $region6: #{tpu_custom_call.1} parent=1 // pred_check
      _
    $region7: #{tpu_custom_call.1} parent=1 // pred_check_branch
      %18 = sbr.rel (0) target = $region9
    $region8: #{tpu_custom_call.1} parent=1 // pred_region
      _
    $region9: #{tpu_custom_call.1} parent=1 // pred_fallthru
      _
    // Predicated region
    $region10: #{tpu_custom_call.1} parent=1 // pred_check
      _
    $region11: #{tpu_custom_call.1} parent=1 // pred_check_branch
      %20 = sbr.rel (0) target = $region13
    $region12: #{tpu_custom_call.1} parent=1 // pred_region
      %21 = dma.done [#allocation4], 16
    $region13: #{tpu_custom_call.1} parent=1 // pred_fallthru
      _
    %22 = sfence
    %s23 = sld [smem:[#allocation2]]
    %s24 = sld [smem:[#allocation2 + $0x1]]
    %v25 = vld [vmem:[%s1] sm:$0x1]
    %v26 = vstv %s23
    %v27 = vsub.f32 %v25, %v26
    %v28 = vmul.f32 %v27, %v27
    %v29 = vstv %s24
    %v30 = vmul.f32 %v29, %v28
    %v31 = vmul.f32 %v30, 1.442695
    %v32 = vpow.pop %v31
    %33 = vst [vmem:[#allocation5] sm:$0x1] %v32
    // Predicated region
    $region14: #{tpu_custom_call.1} parent=1 // pred_check
      _
    $region15: #{tpu_custom_call.1} parent=1 // pred_check_branch
      %35 = sbr.rel (0) target = $region17
    $region16: #{tpu_custom_call.1} parent=1 // pred_region
      %s37 = ssub.s32 16, 16
      %38 = vsyncadd [#allocation3], %s37
      %s40 = sshll.u32 [#allocation5], 4
      %s41 = int_to_ptr.vmem [resolvable:$true] %s40
      %43 = dma.vmem_to_hbm [thread:$0]  %s41, 16, %s2, [#allocation3]
    $region17: #{tpu_custom_call.1} parent=1 // pred_fallthru
      _
    // Predicated region
    $region18: #{tpu_custom_call.1} parent=1 // pred_check
      _
    $region19: #{tpu_custom_call.1} parent=1 // pred_check_branch
      %45 = sbr.rel (0) target = $region21
    $region20: #{tpu_custom_call.1} parent=1 // pred_region
      %46 = dma.done [#allocation3], 16
    $region21: #{tpu_custom_call.1} parent=1 // pred_fallthru
      _
    %47 = vsyncpa [#allocation3], 1
    %48 = vsyncpa [#allocation4], 1

</llo_original>
